<compile_context>
chip_gen: v7x
topology: tpu7x:2x2x1
jax: 0.10.0
libtpu: 0.0.40
codegen_flags: <defaults>
</compile_context>

<pallas_src>
import math
import functools

import jax
import jax.numpy as jnp
from jax.experimental import pallas as pl
from jax.experimental.pallas import tpu as pltpu


# ----------------------------- Pallas kernel -------------------------------

def _normalize(x, eps=1e-5):
    # LayerNorm without the affine part (gamma/beta are folded into the
    # downstream projection weights wrapper-side).  Biased variance, like torch.
    mu = jnp.mean(x, axis=-1, keepdims=True)
    xc = x - mu
    var = jnp.mean(xc * xc, axis=-1, keepdims=True)
    return xc * jax.lax.rsqrt(var + eps)


def encoder_layer_kernel(nhead, n_batch,
                         x_ref,                 # (M, E) f32, row (l, n) -> l*N + n
                         wqkv_ref, bqkv_ref,    # fused qkv proj (E, 3E) bf16, (1, 3E) f32
                         wo_ref, bo_ref,        # attn out proj  (E, E) bf16, (1, E) f32
                         w1_ref, b1_ref,        # linear1        (E, F) bf16, (1, F) f32
                         w2_ref, b2_ref,        # linear2        (F, E) bf16, (1, E) f32
                         o_ref,                 # (M, E) f32
                         qkv_scr):              # VMEM scratch (M, 3E) bf16
    M, E = x_ref.shape
    H = nhead
    N = n_batch
    dh = E // H

    x = x_ref[...]                                           # (M, E) f32

    # --- norm1 (normalization only; affine folded into wqkv/bqkv) ---
    xn = _normalize(x)

    # --- fused Q/K/V projection: one bf16 MXU matmul (scale + affine folded) ---
    qkv = jnp.dot(xn.astype(jnp.bfloat16), wqkv_ref[...],
                  preferred_element_type=jnp.float32) + bqkv_ref[...]   # (M, 3E) f32

    # Park in bf16 VMEM scratch so the per-head tiles below are static
    # ref-view loads, not lane-select shuffles on a live vreg value.
    qkv_scr[...] = qkv.astype(jnp.bfloat16)

    # Rows i and j belong to the same batch element iff i % N == j % N,
    # so batched attention == masked softmax over a block-structured (M, M)
    # score matrix.  Mask is head-independent -> built once.
    row = jax.lax.broadcasted_iota(jnp.int32, (M, M), 0)
    col = jax.lax.broadcasted_iota(jnp.int32, (M, M), 1)
    same_batch = (row % N) == (col % N)
    neg_big = jnp.float32(-1e30)

    # --- self attention: all rows at once per head ---
    heads = []
    for h in range(H):                                       # static, tiny H
        q = qkv_scr[:, h * dh:(h + 1) * dh]                  # (M, dh) bf16 ref view
        k = qkv_scr[:, E + h * dh:E + (h + 1) * dh]
        v = qkv_scr[:, 2 * E + h * dh:2 * E + (h + 1) * dh]
        # q @ k^T with the transpose folded into MXU operand routing.
        s = jax.lax.dot_general(q, k, (((1,), (1,)), ((), ())),
                                preferred_element_type=jnp.float32)     # (M, M) f32
        s = jnp.where(same_batch, s, neg_big)
        m = jnp.max(s, axis=-1, keepdims=True)
        p = jnp.exp(s - m)
        p = p * pl.reciprocal(jnp.sum(p, axis=-1, keepdims=True), approx=True)
        heads.append(jnp.dot(p.astype(jnp.bfloat16), v,
                             preferred_element_type=jnp.float32))       # (M, dh) f32
    attn = jnp.concatenate(heads, axis=-1)                   # (M, E) f32, full lane width

    # --- attention output projection (single matmul) + residual 1 ---
    attn = jnp.dot(attn.astype(jnp.bfloat16), wo_ref[...],
                   preferred_element_type=jnp.float32) + bo_ref[...]
    r1 = x + attn                                            # dropout1 = identity

    # --- norm2 (affine folded into w1/b1) + feed-forward (relu) ---
    r1n = _normalize(r1)
    h1 = jnp.dot(r1n.astype(jnp.bfloat16), w1_ref[...],
                 preferred_element_type=jnp.float32) + b1_ref[...]
    h1 = jnp.maximum(h1, 0.0)
    ff = jnp.dot(h1.astype(jnp.bfloat16), w2_ref[...],
                 preferred_element_type=jnp.float32) + b2_ref[...]

    # --- residual 2: one dense, lane-dense output store ---
    o_ref[...] = (r1 + ff).astype(o_ref.dtype)


# ----------------------------- wrapper --------------------------------------

def custom_encoder_layer(src, params, nhead):
    """src: (L, N, E) float32 (PyTorch seq-first layout). Returns same shape."""
    L, N, E = src.shape
    assert E % nhead == 0
    dh = E // nhead
    scale = 1.0 / math.sqrt(dh)
    F_dim = params["w1"].shape[1]
    M = L * N

    # Fused QKV (right-multiply form) with the 1/sqrt(dh) scale folded into Q.
    wqkv = jnp.concatenate([params["wq"] * scale, params["wk"], params["wv"]], axis=1)
    bqkv = jnp.concatenate([params["bq"] * scale, params["bk"], params["bv"]], axis=1)

    # Fold LayerNorm affines into the downstream projections (one-time, wrapper-side):
    #   norm1 gamma/beta -> fused QKV,  norm2 gamma/beta -> linear1.
    wqkv_f = params["g1"].T * wqkv                     # diag(g1) @ Wqkv
    bqkv_f = params["be1"] @ wqkv + bqkv               # be1 @ Wqkv + bqkv
    w1_f = params["g2"].T * params["w1"]
    b1_f = params["be2"] @ params["w1"] + params["b1"]

    # Weight matrices in bf16 (MXU-native); biases stay f32.
    bf16 = lambda w: w.astype(jnp.bfloat16)
    weights = [
        bf16(wqkv_f), bqkv_f,
        bf16(params["wo"]), params["bo"],
        bf16(w1_f), b1_f,
        bf16(params["w2"]), params["b2"],
    ]

    # (L, N, E) -> (L*N, E) is a row-major collapse: a FREE reshape
    # (no transpose kernel, no extra HBM pass).
    x2d = src.reshape(M, E)

    flops = (2 * M * E * 3 * E                       # fused QKV
             + nhead * (2 * M * M * dh) * 2          # scores + P@V per head
             + 2 * M * E * E                         # out proj
             + 2 * M * E * F_dim + 2 * M * F_dim * E)  # FFN
    transcendentals = nhead * M * M + 4 * M
    bytes_accessed = (4 * 2 * M * E                                   # x in + out, f32
                      + 2 * (3 * E * E + E * E + E * F_dim + F_dim * E)  # bf16 weights
                      + 4 * (3 * E + E + F_dim + E))                  # f32 biases

    out2d = pl.pallas_call(
        functools.partial(encoder_layer_kernel, nhead, N),
        out_shape=jax.ShapeDtypeStruct((M, E), jnp.float32),
        scratch_shapes=[pltpu.VMEM((M, 3 * E), jnp.bfloat16)],
        compiler_params=pltpu.CompilerParams(vmem_limit_bytes=32 * 1024 * 1024),
        cost_estimate=pl.CostEstimate(flops=flops,
                                      transcendentals=transcendentals,
                                      bytes_accessed=bytes_accessed),
    )(x2d, *weights)

    return out2d.reshape(L, N, E)                      # free reshape back


# ----------------------------- reference (pure JAX, f32) ---------------------

def reference_encoder_layer(src, params, nhead):
    L, N, E = src.shape
    dh = E // nhead

    def ln(x, g, b, eps=1e-5):
        mu = jnp.mean(x, axis=-1, keepdims=True)
        var = jnp.mean((x - mu) ** 2, axis=-1, keepdims=True)
        return (x - mu) / jnp.sqrt(var + eps) * g + b

    x = jnp.transpose(src, (1, 0, 2))                      # (N, L, E)
    xn = ln(x, params["g1"], params["be1"])
    q = xn @ params["wq"] + params["bq"]
    k = xn @ params["wk"] + params["bk"]
    v = xn @ params["wv"] + params["bv"]
    q = q.reshape(N, L, nhead, dh).transpose(0, 2, 1, 3)
    k = k.reshape(N, L, nhead, dh).transpose(0, 2, 1, 3)
    v = v.reshape(N, L, nhead, dh).transpose(0, 2, 1, 3)
    s = jnp.einsum("nhqd,nhkd->nhqk", q, k) / math.sqrt(dh)
    p = jax.nn.softmax(s, axis=-1)
    a = jnp.einsum("nhqk,nhkd->nhqd", p, v).transpose(0, 2, 1, 3).reshape(N, L, E)
    a = a @ params["wo"] + params["bo"]
    r1 = x + a
    r1n = ln(r1, params["g2"], params["be2"])
    ff = jnp.maximum(r1n @ params["w1"] + params["b1"], 0.0) @ params["w2"] + params["b2"]
    return jnp.transpose(r1 + ff, (1, 0, 2))


# ----------------------------- main -----------------------------------------

if __name__ == "__main__":
    L, N, E, H, F_dim = 8, 2, 32, 4, 64

    key = jax.random.PRNGKey(0)
    keys = jax.random.split(key, 20)

    def winit(k, shape, fan_in):
        bound = 1.0 / math.sqrt(fan_in)
        return jax.random.uniform(k, shape, jnp.float32, -bound, bound)

    params = {
        # LayerNorm params — randomized (not 1/0) so the affine folding is exercised.
        "g1": 1.0 + 0.1 * jax.random.normal(keys[13], (1, E), jnp.float32),
        "be1": 0.1 * jax.random.normal(keys[14], (1, E), jnp.float32),
        "g2": 1.0 + 0.1 * jax.random.normal(keys[15], (1, E), jnp.float32),
        "be2": 0.1 * jax.random.normal(keys[16], (1, E), jnp.float32),
        # in_proj (q/k/v) — stored in right-multiply form (E_in, E_out)
        "wq": winit(keys[0], (E, E), E), "wk": winit(keys[1], (E, E), E),
        "wv": winit(keys[2], (E, E), E),
        "bq": winit(keys[3], (1, E), E), "bk": winit(keys[4], (1, E), E),
        "bv": winit(keys[5], (1, E), E),
        # out_proj
        "wo": winit(keys[6], (E, E), E), "bo": winit(keys[7], (1, E), E),
        # feed-forward
        "w1": winit(keys[8], (E, F_dim), E),      "b1": winit(keys[9], (1, F_dim), E),
        "w2": winit(keys[10], (F_dim, E), F_dim), "b2": winit(keys[11], (1, E), F_dim),
    }

    src = jax.random.normal(keys[12], (L, N, E), jnp.float32)

    out = jax.block_until_ready(custom_encoder_layer(src, params, H))
    ref = reference_encoder_layer(src, params, H)

    assert out.shape == (L, N, E)
    # bf16 MXU operands + approx-reciprocal softmax => relaxed tolerance vs f32 reference.
    assert jnp.allclose(out, ref, atol=5e-2, rtol=5e-2), "mismatch vs pure-JAX reference"

    print("KERNEL_OK")
</pallas_src>

<mosaic_0001>
module attributes {stable_mosaic.version = 11 : i64} {
  func.func @encoder_layer_kernel(%arg0: memref<16x32xf32, #tpu.memory_space<vmem>>, %arg1: memref<32x96xbf16, #tpu.memory_space<vmem>>, %arg2: memref<1x96xf32, #tpu.memory_space<vmem>>, %arg3: memref<32x32xbf16, #tpu.memory_space<vmem>>, %arg4: memref<1x32xf32, #tpu.memory_space<vmem>>, %arg5: memref<32x64xbf16, #tpu.memory_space<vmem>>, %arg6: memref<1x64xf32, #tpu.memory_space<vmem>>, %arg7: memref<64x32xbf16, #tpu.memory_space<vmem>>, %arg8: memref<1x32xf32, #tpu.memory_space<vmem>>, %arg9: memref<16x32xf32, #tpu.memory_space<vmem>>, %arg10: memref<16x96xbf16, #tpu.memory_space<vmem>>) attributes {dimension_semantics = [], scalar_prefetch = 0 : i64, scratch_operands = 1 : i64, tpu.core_type = #tpu.core_type<tc>} {
    %c0 = arith.constant 0 : index
    %c0_0 = arith.constant 0 : index
    %0 = vector.load %arg0[%c0, %c0_0] : memref<16x32xf32, #tpu.memory_space<vmem>>, vector<16x32xf32>
    %cst = arith.constant dense<0.000000e+00> : vector<16xf32>
    %1 = vector.multi_reduction <add>, %0, %cst [1] : vector<16x32xf32> to vector<16xf32>
    %2 = vector.shape_cast %1 : vector<16xf32> to vector<16x1xf32>
    %cst_1 = arith.constant 3.200000e+01 : f32
    %3 = vector.broadcast %cst_1 : f32 to vector<16x1xf32>
    %4 = arith.divf %2, %3 : vector<16x1xf32>
    %5 = vector.broadcast %4 : vector<16x1xf32> to vector<16x32xf32>
    %6 = arith.subf %0, %5 : vector<16x32xf32>
    %7 = arith.mulf %6, %6 : vector<16x32xf32>
    %cst_2 = arith.constant dense<0.000000e+00> : vector<16xf32>
    %8 = vector.multi_reduction <add>, %7, %cst_2 [1] : vector<16x32xf32> to vector<16xf32>
    %9 = vector.shape_cast %8 : vector<16xf32> to vector<16x1xf32>
    %cst_3 = arith.constant 3.200000e+01 : f32
    %10 = vector.broadcast %cst_3 : f32 to vector<16x1xf32>
    %11 = arith.divf %9, %10 : vector<16x1xf32>
    %cst_4 = arith.constant 9.99999974E-6 : f32
    %12 = vector.broadcast %cst_4 : f32 to vector<16x1xf32>
    %13 = arith.addf %11, %12 : vector<16x1xf32>
    %14 = math.rsqrt %13 : vector<16x1xf32>
    %15 = vector.broadcast %14 : vector<16x1xf32> to vector<16x32xf32>
    %16 = arith.mulf %6, %15 : vector<16x32xf32>
    %17 = arith.truncf %16 : vector<16x32xf32> to vector<16x32xbf16>
    %c0_5 = arith.constant 0 : index
    %c0_6 = arith.constant 0 : index
    %18 = vector.load %arg1[%c0_5, %c0_6] : memref<32x96xbf16, #tpu.memory_space<vmem>>, vector<32x96xbf16>
    %cst_7 = arith.constant dense<0.000000e+00> : vector<16x96xf32>
    %19 = tpu.matmul %17, %18, %cst_7 {dimension_numbers = #tpu.dot_dimension_numbers<[1], [0], [0], [1], [0, 0, 1, 1], [], []>} : vector<16x32xbf16>, vector<32x96xbf16>, vector<16x96xf32> -> vector<16x96xf32>
    %c0_8 = arith.constant 0 : index
    %c0_9 = arith.constant 0 : index
    %20 = vector.load %arg2[%c0_8, %c0_9] : memref<1x96xf32, #tpu.memory_space<vmem>>, vector<1x96xf32>
    %21 = vector.broadcast %20 : vector<1x96xf32> to vector<16x96xf32>
    %22 = arith.addf %19, %21 : vector<16x96xf32>
    %23 = arith.truncf %22 : vector<16x96xf32> to vector<16x96xbf16>
    %c0_10 = arith.constant 0 : index
    %c0_11 = arith.constant 0 : index
    %24 = vector.load %arg10[%c0_10, %c0_11] : memref<16x96xbf16, #tpu.memory_space<vmem>>, vector<16x96xbf16>
    tpu.vector_store %arg10[%c0_10, %c0_11], %23 {strides = array<i32>} : memref<16x96xbf16, #tpu.memory_space<vmem>>, vector<16x96xbf16>,
    %25 = tpu.iota {dimensions = array<i32: 0>} : vector<16x16xi32>
    %26 = tpu.iota {dimensions = array<i32: 1>} : vector<16x16xi32>
    %c2_i32 = arith.constant 2 : i32
    %c0_i32 = arith.constant 0 : i32
    %27 = arith.cmpi eq, %c2_i32, %c0_i32 : i32
    %c1_i32 = arith.constant 1 : i32
    %28 = arith.select %27, %c1_i32, %c2_i32 : i32
    %29 = vector.broadcast %28 : i32 to vector<16x16xi32>
    %30 = arith.remsi %25, %29 : vector<16x16xi32>
    %c0_i32_12 = arith.constant 0 : i32
    %31 = vector.broadcast %c0_i32_12 : i32 to vector<16x16xi32>
    %32 = arith.cmpi ne, %30, %31 : vector<16x16xi32>
    %c0_i32_13 = arith.constant 0 : i32
    %33 = vector.broadcast %c0_i32_13 : i32 to vector<16x16xi32>
    %34 = arith.cmpi slt, %30, %33 : vector<16x16xi32>
    %c0_i32_14 = arith.constant 0 : i32
    %35 = arith.cmpi slt, %28, %c0_i32_14 : i32
    %36 = vector.broadcast %35 : i1 to vector<16x16xi1>
    %37 = vector.broadcast %36 : vector<16x16xi1> to vector<16x16xi1>
    %38 = arith.xori %34, %37 : vector<16x16xi1>
    %39 = arith.andi %38, %32 : vector<16x16xi1>
    %40 = vector.broadcast %28 : i32 to vector<16x16xi32>
    %41 = arith.addi %30, %40 : vector<16x16xi32>
    %42 = arith.select %39, %41, %30 : vector<16x16xi1>, vector<16x16xi32>
    %c2_i32_15 = arith.constant 2 : i32
    %c0_i32_16 = arith.constant 0 : i32
    %43 = arith.cmpi eq, %c2_i32_15, %c0_i32_16 : i32
    %c1_i32_17 = arith.constant 1 : i32
    %44 = arith.select %43, %c1_i32_17, %c2_i32_15 : i32
    %45 = vector.broadcast %44 : i32 to vector<16x16xi32>
    %46 = arith.remsi %26, %45 : vector<16x16xi32>
    %c0_i32_18 = arith.constant 0 : i32
    %47 = vector.broadcast %c0_i32_18 : i32 to vector<16x16xi32>
    %48 = arith.cmpi ne, %46, %47 : vector<16x16xi32>
    %c0_i32_19 = arith.constant 0 : i32
    %49 = vector.broadcast %c0_i32_19 : i32 to vector<16x16xi32>
    %50 = arith.cmpi slt, %46, %49 : vector<16x16xi32>
    %c0_i32_20 = arith.constant 0 : i32
    %51 = arith.cmpi slt, %44, %c0_i32_20 : i32
    %52 = vector.broadcast %51 : i1 to vector<16x16xi1>
    %53 = vector.broadcast %52 : vector<16x16xi1> to vector<16x16xi1>
    %54 = arith.xori %50, %53 : vector<16x16xi1>
    %55 = arith.andi %54, %48 : vector<16x16xi1>
    %56 = vector.broadcast %44 : i32 to vector<16x16xi32>
    %57 = arith.addi %46, %56 : vector<16x16xi32>
    %58 = arith.select %55, %57, %46 : vector<16x16xi1>, vector<16x16xi32>
    %59 = arith.cmpi eq, %42, %58 : vector<16x16xi32>
    %c0_21 = arith.constant 0 : index
    %c0_22 = arith.constant 0 : index
    %60 = vector.load %arg10[%c0_21, %c0_22] : memref<16x96xbf16, #tpu.memory_space<vmem>>, vector<16x8xbf16>
    %c0_23 = arith.constant 0 : index
    %c32 = arith.constant 32 : index
    %61 = vector.load %arg10[%c0_23, %c32] : memref<16x96xbf16, #tpu.memory_space<vmem>>, vector<16x8xbf16>
    %c0_24 = arith.constant 0 : index
    %c64 = arith.constant 64 : index
    %62 = vector.load %arg10[%c0_24, %c64] : memref<16x96xbf16, #tpu.memory_space<vmem>>, vector<16x8xbf16>
    %cst_25 = arith.constant dense<0.000000e+00> : vector<16x16xf32>
    %63 = tpu.matmul %60, %61, %cst_25 {dimension_numbers = #tpu.dot_dimension_numbers<[1], [1], [0], [0], [0, 0, 1, 0], [], []>} : vector<16x8xbf16>, vector<16x8xbf16>, vector<16x16xf32> -> vector<16x16xf32>
    %cst_26 = arith.constant -1.000000e+30 : f32
    %64 = vector.broadcast %cst_26 : f32 to vector<16x16xf32>
    %65 = arith.select %59, %63, %64 : vector<16x16xi1>, vector<16x16xf32>
    %cst_27 = arith.constant dense<0xFF800000> : vector<16xf32>
    %66 = vector.multi_reduction <maximumf>, %65, %cst_27 [1] : vector<16x16xf32> to vector<16xf32>
    %67 = vector.shape_cast %66 : vector<16xf32> to vector<16x1xf32>
    %68 = vector.broadcast %67 : vector<16x1xf32> to vector<16x16xf32>
    %69 = arith.subf %65, %68 : vector<16x16xf32>
    %70 = math.exp %69 : vector<16x16xf32>
    %cst_28 = arith.constant dense<0.000000e+00> : vector<16xf32>
    %71 = vector.multi_reduction <add>, %70, %cst_28 [1] : vector<16x16xf32> to vector<16xf32>
    %72 = vector.shape_cast %71 : vector<16xf32> to vector<16x1xf32>
    %73 = tpu.reciprocal %72 {approx = true} : vector<16x1xf32> -> vector<16x1xf32>
    %74 = vector.broadcast %73 : vector<16x1xf32> to vector<16x16xf32>
    %75 = arith.mulf %70, %74 : vector<16x16xf32>
    %76 = arith.truncf %75 : vector<16x16xf32> to vector<16x16xbf16>
    %cst_29 = arith.constant dense<0.000000e+00> : vector<16x8xf32>
    %77 = tpu.matmul %76, %62, %cst_29 {dimension_numbers = #tpu.dot_dimension_numbers<[1], [0], [0], [1], [0, 0, 1, 1], [], []>} : vector<16x16xbf16>, vector<16x8xbf16>, vector<16x8xf32> -> vector<16x8xf32>
    %c0_30 = arith.constant 0 : index
    %c8 = arith.constant 8 : index
    %78 = vector.load %arg10[%c0_30, %c8] : memref<16x96xbf16, #tpu.memory_space<vmem>>, vector<16x8xbf16>
    %c0_31 = arith.constant 0 : index
    %c40 = arith.constant 40 : index
    %79 = vector.load %arg10[%c0_31, %c40] : memref<16x96xbf16, #tpu.memory_space<vmem>>, vector<16x8xbf16>
    %c0_32 = arith.constant 0 : index
    %c72 = arith.constant 72 : index
    %80 = vector.load %arg10[%c0_32, %c72] : memref<16x96xbf16, #tpu.memory_space<vmem>>, vector<16x8xbf16>
    %cst_33 = arith.constant dense<0.000000e+00> : vector<16x16xf32>
    %81 = tpu.matmul %78, %79, %cst_33 {dimension_numbers = #tpu.dot_dimension_numbers<[1], [1], [0], [0], [0, 0, 1, 0], [], []>} : vector<16x8xbf16>, vector<16x8xbf16>, vector<16x16xf32> -> vector<16x16xf32>
    %cst_34 = arith.constant -1.000000e+30 : f32
    %82 = vector.broadcast %cst_34 : f32 to vector<16x16xf32>
    %83 = arith.select %59, %81, %82 : vector<16x16xi1>, vector<16x16xf32>
    %cst_35 = arith.constant dense<0xFF800000> : vector<16xf32>
    %84 = vector.multi_reduction <maximumf>, %83, %cst_35 [1] : vector<16x16xf32> to vector<16xf32>
    %85 = vector.shape_cast %84 : vector<16xf32> to vector<16x1xf32>
    %86 = vector.broadcast %85 : vector<16x1xf32> to vector<16x16xf32>
    %87 = arith.subf %83, %86 : vector<16x16xf32>
    %88 = math.exp %87 : vector<16x16xf32>
    %cst_36 = arith.constant dense<0.000000e+00> : vector<16xf32>
    %89 = vector.multi_reduction <add>, %88, %cst_36 [1] : vector<16x16xf32> to vector<16xf32>
    %90 = vector.shape_cast %89 : vector<16xf32> to vector<16x1xf32>
    %91 = tpu.reciprocal %90 {approx = true} : vector<16x1xf32> -> vector<16x1xf32>
    %92 = vector.broadcast %91 : vector<16x1xf32> to vector<16x16xf32>
    %93 = arith.mulf %88, %92 : vector<16x16xf32>
    %94 = arith.truncf %93 : vector<16x16xf32> to vector<16x16xbf16>
    %cst_37 = arith.constant dense<0.000000e+00> : vector<16x8xf32>
    %95 = tpu.matmul %94, %80, %cst_37 {dimension_numbers = #tpu.dot_dimension_numbers<[1], [0], [0], [1], [0, 0, 1, 1], [], []>} : vector<16x16xbf16>, vector<16x8xbf16>, vector<16x8xf32> -> vector<16x8xf32>
    %c0_38 = arith.constant 0 : index
    %c16 = arith.constant 16 : index
    %96 = vector.load %arg10[%c0_38, %c16] : memref<16x96xbf16, #tpu.memory_space<vmem>>, vector<16x8xbf16>
    %c0_39 = arith.constant 0 : index
    %c48 = arith.constant 48 : index
    %97 = vector.load %arg10[%c0_39, %c48] : memref<16x96xbf16, #tpu.memory_space<vmem>>, vector<16x8xbf16>
    %c0_40 = arith.constant 0 : index
    %c80 = arith.constant 80 : index
    %98 = vector.load %arg10[%c0_40, %c80] : memref<16x96xbf16, #tpu.memory_space<vmem>>, vector<16x8xbf16>
    %cst_41 = arith.constant dense<0.000000e+00> : vector<16x16xf32>
    %99 = tpu.matmul %96, %97, %cst_41 {dimension_numbers = #tpu.dot_dimension_numbers<[1], [1], [0], [0], [0, 0, 1, 0], [], []>} : vector<16x8xbf16>, vector<16x8xbf16>, vector<16x16xf32> -> vector<16x16xf32>
    %cst_42 = arith.constant -1.000000e+30 : f32
    %100 = vector.broadcast %cst_42 : f32 to vector<16x16xf32>
    %101 = arith.select %59, %99, %100 : vector<16x16xi1>, vector<16x16xf32>
    %cst_43 = arith.constant dense<0xFF800000> : vector<16xf32>
    %102 = vector.multi_reduction <maximumf>, %101, %cst_43 [1] : vector<16x16xf32> to vector<16xf32>
    %103 = vector.shape_cast %102 : vector<16xf32> to vector<16x1xf32>
    %104 = vector.broadcast %103 : vector<16x1xf32> to vector<16x16xf32>
    %105 = arith.subf %101, %104 : vector<16x16xf32>
    %106 = math.exp %105 : vector<16x16xf32>
    %cst_44 = arith.constant dense<0.000000e+00> : vector<16xf32>
    %107 = vector.multi_reduction <add>, %106, %cst_44 [1] : vector<16x16xf32> to vector<16xf32>
    %108 = vector.shape_cast %107 : vector<16xf32> to vector<16x1xf32>
    %109 = tpu.reciprocal %108 {approx = true} : vector<16x1xf32> -> vector<16x1xf32>
    %110 = vector.broadcast %109 : vector<16x1xf32> to vector<16x16xf32>
    %111 = arith.mulf %106, %110 : vector<16x16xf32>
    %112 = arith.truncf %111 : vector<16x16xf32> to vector<16x16xbf16>
    %cst_45 = arith.constant dense<0.000000e+00> : vector<16x8xf32>
    %113 = tpu.matmul %112, %98, %cst_45 {dimension_numbers = #tpu.dot_dimension_numbers<[1], [0], [0], [1], [0, 0, 1, 1], [], []>} : vector<16x16xbf16>, vector<16x8xbf16>, vector<16x8xf32> -> vector<16x8xf32>
    %c0_46 = arith.constant 0 : index
    %c24 = arith.constant 24 : index
    %114 = vector.load %arg10[%c0_46, %c24] : memref<16x96xbf16, #tpu.memory_space<vmem>>, vector<16x8xbf16>
    %c0_47 = arith.constant 0 : index
    %c56 = arith.constant 56 : index
    %115 = vector.load %arg10[%c0_47, %c56] : memref<16x96xbf16, #tpu.memory_space<vmem>>, vector<16x8xbf16>
    %c0_48 = arith.constant 0 : index
    %c88 = arith.constant 88 : index
    %116 = vector.load %arg10[%c0_48, %c88] : memref<16x96xbf16, #tpu.memory_space<vmem>>, vector<16x8xbf16>
    %cst_49 = arith.constant dense<0.000000e+00> : vector<16x16xf32>
    %117 = tpu.matmul %114, %115, %cst_49 {dimension_numbers = #tpu.dot_dimension_numbers<[1], [1], [0], [0], [0, 0, 1, 0], [], []>} : vector<16x8xbf16>, vector<16x8xbf16>, vector<16x16xf32> -> vector<16x16xf32>
    %cst_50 = arith.constant -1.000000e+30 : f32
    %118 = vector.broadcast %cst_50 : f32 to vector<16x16xf32>
    %119 = arith.select %59, %117, %118 : vector<16x16xi1>, vector<16x16xf32>
    %cst_51 = arith.constant dense<0xFF800000> : vector<16xf32>
    %120 = vector.multi_reduction <maximumf>, %119, %cst_51 [1] : vector<16x16xf32> to vector<16xf32>
    %121 = vector.shape_cast %120 : vector<16xf32> to vector<16x1xf32>
    %122 = vector.broadcast %121 : vector<16x1xf32> to vector<16x16xf32>
    %123 = arith.subf %119, %122 : vector<16x16xf32>
    %124 = math.exp %123 : vector<16x16xf32>
    %cst_52 = arith.constant dense<0.000000e+00> : vector<16xf32>
    %125 = vector.multi_reduction <add>, %124, %cst_52 [1] : vector<16x16xf32> to vector<16xf32>
    %126 = vector.shape_cast %125 : vector<16xf32> to vector<16x1xf32>
    %127 = tpu.reciprocal %126 {approx = true} : vector<16x1xf32> -> vector<16x1xf32>
    %128 = vector.broadcast %127 : vector<16x1xf32> to vector<16x16xf32>
    %129 = arith.mulf %124, %128 : vector<16x16xf32>
    %130 = arith.truncf %129 : vector<16x16xf32> to vector<16x16xbf16>
    %cst_53 = arith.constant dense<0.000000e+00> : vector<16x8xf32>
    %131 = tpu.matmul %130, %116, %cst_53 {dimension_numbers = #tpu.dot_dimension_numbers<[1], [0], [0], [1], [0, 0, 1, 1], [], []>} : vector<16x16xbf16>, vector<16x8xbf16>, vector<16x8xf32> -> vector<16x8xf32>
    %132 = tpu.concatenate %77, %95, %113, %131 in 1 : vector<16x8xf32>, vector<16x8xf32>, vector<16x8xf32>, vector<16x8xf32> -> vector<16x32xf32>
    %133 = arith.truncf %132 : vector<16x32xf32> to vector<16x32xbf16>
    %c0_54 = arith.constant 0 : index
    %c0_55 = arith.constant 0 : index
    %134 = vector.load %arg3[%c0_54, %c0_55] : memref<32x32xbf16, #tpu.memory_space<vmem>>, vector<32x32xbf16>
    %cst_56 = arith.constant dense<0.000000e+00> : vector<16x32xf32>
    %135 = tpu.matmul %133, %134, %cst_56 {dimension_numbers = #tpu.dot_dimension_numbers<[1], [0], [0], [1], [0, 0, 1, 1], [], []>} : vector<16x32xbf16>, vector<32x32xbf16>, vector<16x32xf32> -> vector<16x32xf32>
    %c0_57 = arith.constant 0 : index
    %c0_58 = arith.constant 0 : index
    %136 = vector.load %arg4[%c0_57, %c0_58] : memref<1x32xf32, #tpu.memory_space<vmem>>, vector<1x32xf32>
    %137 = vector.broadcast %136 : vector<1x32xf32> to vector<16x32xf32>
    %138 = arith.addf %135, %137 : vector<16x32xf32>
    %139 = arith.addf %0, %138 : vector<16x32xf32>
    %cst_59 = arith.constant dense<0.000000e+00> : vector<16xf32>
    %140 = vector.multi_reduction <add>, %139, %cst_59 [1] : vector<16x32xf32> to vector<16xf32>
    %141 = vector.shape_cast %140 : vector<16xf32> to vector<16x1xf32>
    %cst_60 = arith.constant 3.200000e+01 : f32
    %142 = vector.broadcast %cst_60 : f32 to vector<16x1xf32>
    %143 = arith.divf %141, %142 : vector<16x1xf32>
    %144 = vector.broadcast %143 : vector<16x1xf32> to vector<16x32xf32>
    %145 = arith.subf %139, %144 : vector<16x32xf32>
    %146 = arith.mulf %145, %145 : vector<16x32xf32>
    %cst_61 = arith.constant dense<0.000000e+00> : vector<16xf32>
    %147 = vector.multi_reduction <add>, %146, %cst_61 [1] : vector<16x32xf32> to vector<16xf32>
    %148 = vector.shape_cast %147 : vector<16xf32> to vector<16x1xf32>
    %cst_62 = arith.constant 3.200000e+01 : f32
    %149 = vector.broadcast %cst_62 : f32 to vector<16x1xf32>
    %150 = arith.divf %148, %149 : vector<16x1xf32>
    %cst_63 = arith.constant 9.99999974E-6 : f32
    %151 = vector.broadcast %cst_63 : f32 to vector<16x1xf32>
    %152 = arith.addf %150, %151 : vector<16x1xf32>
    %153 = math.rsqrt %152 : vector<16x1xf32>
    %154 = vector.broadcast %153 : vector<16x1xf32> to vector<16x32xf32>
    %155 = arith.mulf %145, %154 : vector<16x32xf32>
    %156 = arith.truncf %155 : vector<16x32xf32> to vector<16x32xbf16>
    %c0_64 = arith.constant 0 : index
    %c0_65 = arith.constant 0 : index
    %157 = vector.load %arg5[%c0_64, %c0_65] : memref<32x64xbf16, #tpu.memory_space<vmem>>, vector<32x64xbf16>
    %cst_66 = arith.constant dense<0.000000e+00> : vector<16x64xf32>
    %158 = tpu.matmul %156, %157, %cst_66 {dimension_numbers = #tpu.dot_dimension_numbers<[1], [0], [0], [1], [0, 0, 1, 1], [], []>} : vector<16x32xbf16>, vector<32x64xbf16>, vector<16x64xf32> -> vector<16x64xf32>
    %c0_67 = arith.constant 0 : index
    %c0_68 = arith.constant 0 : index
    %159 = vector.load %arg6[%c0_67, %c0_68] : memref<1x64xf32, #tpu.memory_space<vmem>>, vector<1x64xf32>
    %160 = vector.broadcast %159 : vector<1x64xf32> to vector<16x64xf32>
    %161 = arith.addf %158, %160 : vector<16x64xf32>
    %cst_69 = arith.constant 0.000000e+00 : f32
    %162 = vector.broadcast %cst_69 : f32 to vector<16x64xf32>
    %163 = arith.maximumf %161, %162 : vector<16x64xf32>
    %164 = arith.truncf %163 : vector<16x64xf32> to vector<16x64xbf16>
    %c0_70 = arith.constant 0 : index
    %c0_71 = arith.constant 0 : index
    %165 = vector.load %arg7[%c0_70, %c0_71] : memref<64x32xbf16, #tpu.memory_space<vmem>>, vector<64x32xbf16>
    %cst_72 = arith.constant dense<0.000000e+00> : vector<16x32xf32>
    %166 = tpu.matmul %164, %165, %cst_72 {dimension_numbers = #tpu.dot_dimension_numbers<[1], [0], [0], [1], [0, 0, 1, 1], [], []>} : vector<16x64xbf16>, vector<64x32xbf16>, vector<16x32xf32> -> vector<16x32xf32>
    %c0_73 = arith.constant 0 : index
    %c0_74 = arith.constant 0 : index
    %167 = vector.load %arg8[%c0_73, %c0_74] : memref<1x32xf32, #tpu.memory_space<vmem>>, vector<1x32xf32>
    %168 = vector.broadcast %167 : vector<1x32xf32> to vector<16x32xf32>
    %169 = arith.addf %166, %168 : vector<16x32xf32>
    %170 = arith.addf %139, %169 : vector<16x32xf32>
    %c0_75 = arith.constant 0 : index
    %c0_76 = arith.constant 0 : index
    %171 = vector.load %arg9[%c0_75, %c0_76] : memref<16x32xf32, #tpu.memory_space<vmem>>, vector<16x32xf32>
    tpu.vector_store %arg9[%c0_75, %c0_76], %170 {strides = array<i32>} : memref<16x32xf32, #tpu.memory_space<vmem>>, vector<16x32xf32>,
    return
  }
}

</mosaic_0001>

<llo_original>
// kernel: tpu_custom_call.1
$region0: #{tpu_custom_call.1}
  #allocation0 [shape = 'u32[]', space=smem, size = 0x4, offset = 0x4, fixed_abs, tag = 'smem constant byte address 0x4 - core index']
  #allocation1 [shape = 'u32[144,128]{1,0:T(1,128)}', space=vmem, size = 0x12000, scoped, tag = 'internal scratch']
  #allocation2 [shape = 'bf16[16,96]{1,0:T(16,128)(2,1)}', space=vmem, size = 0x1000, scoped, tag = 'scratch operand']
  %s0 = inlined_call_operand.vmem [shape: f32[16,32], index: 0, kind: input, shape index: {}]
  %s1 = inlined_call_operand.vmem [shape: bf16[32,96], index: 1, kind: input, shape index: {}]
  %s2 = inlined_call_operand.vmem [shape: f32[1,96], index: 2, kind: input, shape index: {}]
  %s3 = inlined_call_operand.vmem [shape: bf16[32,32], index: 3, kind: input, shape index: {}]
  %s4 = inlined_call_operand.vmem [shape: f32[1,32], index: 4, kind: input, shape index: {}]
  %s5 = inlined_call_operand.hbm [shape: bf16[32,64], index: 5, kind: input, shape index: {}]
  %s6 = inlined_call_operand.vmem [shape: f32[1,64], index: 6, kind: input, shape index: {}]
  %s7 = inlined_call_operand.vmem [shape: bf16[64,32], index: 7, kind: input, shape index: {}]
  %s8 = inlined_call_operand.vmem [shape: f32[1,32], index: 8, kind: input, shape index: {}]
  %s9 = inlined_call_operand.hbm [shape: f32[16,32], index: 9, kind: output, shape index: {}]
  %s10 = sld [smem:[#allocation0]]
  $region50: #{tpu_custom_call.1} parent=0
    _
  %s12 = ssub.s32 1, %s10
  %s13 = scalar_select 0, %s12, %s10
  $region1: #{tpu_custom_call.1} parent=0
    #allocation3 [shape = 'u8[8192]{0}', space=vmem, size = 0x2000, scoped, tag = 'input window, operand 5, single buffered']
    #allocation4 [shape = 's32[1]{0}', space=sflag, size = 0x4, scoped, tag = 'scoped memory for tpu_custom_call.1']
    #allocation5 [shape = 's32[1]{0}', space=sflag, size = 0x4, scoped, tag = 'scoped memory for tpu_custom_call.1']
    #allocation6 [shape = 'u8[8192]{0}', space=vmem, size = 0x2000, scoped, tag = 'output window, operand 0, single buffered']
    %14 = vsyncpa [#allocation4], 0
    %15 = vsyncpa [#allocation5], 0
    // Predicated region
    $region2: #{tpu_custom_call.1} parent=1 // pred_check
      _
    $region3: #{tpu_custom_call.1} parent=1 // pred_check_branch
      %17 = sbr.rel (0) target = $region5
    $region4: #{tpu_custom_call.1} parent=1 // pred_region
      _
    $region5: #{tpu_custom_call.1} parent=1 // pred_fallthru
      _
    // Predicated region
    $region6: #{tpu_custom_call.1} parent=1 // pred_check
      _
    $region7: #{tpu_custom_call.1} parent=1 // pred_check_branch
      %19 = sbr.rel (0) target = $region9
    $region8: #{tpu_custom_call.1} parent=1 // pred_region
      _
    $region9: #{tpu_custom_call.1} parent=1 // pred_fallthru
      _
    // Predicated region
    $region10: #{tpu_custom_call.1} parent=1 // pred_check
      _
    $region11: #{tpu_custom_call.1} parent=1 // pred_check_branch
      %21 = sbr.rel (0) target = $region13
    $region12: #{tpu_custom_call.1} parent=1 // pred_region
      _
    $region13: #{tpu_custom_call.1} parent=1 // pred_fallthru
      _
    // Predicated region
    $region14: #{tpu_custom_call.1} parent=1 // pred_check
      _
    $region15: #{tpu_custom_call.1} parent=1 // pred_check_branch
      %23 = sbr.rel (0) target = $region17
    $region16: #{tpu_custom_call.1} parent=1 // pred_region
      _
    $region17: #{tpu_custom_call.1} parent=1 // pred_fallthru
      _
    // Predicated region
    $region18: #{tpu_custom_call.1} parent=1 // pred_check
      _
    $region19: #{tpu_custom_call.1} parent=1 // pred_check_branch
      %25 = sbr.rel (0) target = $region21
    $region20: #{tpu_custom_call.1} parent=1 // pred_region
      _
    $region21: #{tpu_custom_call.1} parent=1 // pred_fallthru
      _
    // Predicated region
    $region22: #{tpu_custom_call.1} parent=1 // pred_check
      _
    $region23: #{tpu_custom_call.1} parent=1 // pred_check_branch
      %27 = sbr.rel (0) target = $region25
    $region24: #{tpu_custom_call.1} parent=1 // pred_region
      %s29 = ssub.s32 256, 256
      %30 = vsyncadd [#allocation4], %s29
      %s31 = sshll.u32 [#allocation3], 4
      %s32 = int_to_ptr.vmem [resolvable:$true] %s31
      %37 = dma.hbm_to_vmem [thread:$0]  %s5, 256, %s32, [#allocation4], 64, 64, 4
    $region25: #{tpu_custom_call.1} parent=1 // pred_fallthru
      _
    // Predicated region
    $region26: #{tpu_custom_call.1} parent=1 // pred_check
      _
    $region27: #{tpu_custom_call.1} parent=1 // pred_check_branch
      %39 = sbr.rel (0) target = $region29
    $region28: #{tpu_custom_call.1} parent=1 // pred_region
      _
    $region29: #{tpu_custom_call.1} parent=1 // pred_fallthru
      _
    // Predicated region
    $region30: #{tpu_custom_call.1} parent=1 // pred_check
      _
    $region31: #{tpu_custom_call.1} parent=1 // pred_check_branch
      %41 = sbr.rel (0) target = $region33
    $region32: #{tpu_custom_call.1} parent=1 // pred_region
      _
    $region33: #{tpu_custom_call.1} parent=1 // pred_fallthru
      _
    // Predicated region
    $region34: #{tpu_custom_call.1} parent=1 // pred_check
      _
    $region35: #{tpu_custom_call.1} parent=1 // pred_check_branch
      %43 = sbr.rel (0) target = $region37
    $region36: #{tpu_custom_call.1} parent=1 // pred_region
      _
    $region37: #{tpu_custom_call.1} parent=1 // pred_fallthru
      _
    // Predicated region
    $region38: #{tpu_custom_call.1} parent=1 // pred_check
      _
    $region39: #{tpu_custom_call.1} parent=1 // pred_check_branch
      %45 = sbr.rel (0) target = $region41
    $region40: #{tpu_custom_call.1} parent=1 // pred_region
      %46 = dma.done [#allocation4], 256
    $region41: #{tpu_custom_call.1} parent=1 // pred_fallthru
      _
    %v48 = vld [vmem:[%s0] sm:$0xff]
    %v49 = vld [vmem:[%s0 + $0x8] sm:$0xff]
    %vm50 = vcmask 261120
    %v51 = vsel %vm50, %v48, 0.0
    %52 = vadd.xlane.f32.xlu0 %v51
    %v53 = vpop.xlane.xlu0 %52
    %v54 = vsel %vm50, %v49, 0.0
    %55 = vadd.xlane.f32.xlu0 %v54
    %v56 = vpop.xlane.xlu0 %55
    %v57 = vrcp.pop 32.0
    %v58 = vmul.f32 %v53, %v57
    %v59 = vmul.f32 %v56, %v57
    %v60 = vsub.f32 %v48, %v58
    %v61 = vsub.f32 %v49, %v59
    %v62 = vmul.f32 %v60, %v60
    %v63 = vmul.f32 %v61, %v61
    %v64 = vsel %vm50, %v62, 0.0
    %65 = vadd.xlane.f32.xlu0 %v64
    %v66 = vpop.xlane.xlu0 %65
    %v67 = vsel %vm50, %v63, 0.0
    %68 = vadd.xlane.f32.xlu0 %v67
    %v69 = vpop.xlane.xlu0 %68
    %v70 = vmul.f32 %v66, %v57
    %v71 = vmul.f32 %v69, %v57
    %v72 = vadd.f32 %v70, 1e-05
    %v73 = vadd.f32 %v71, 1e-05
    %v74 = vrsqrt.pop %v72
    %v75 = vrsqrt.pop %v73
    %v76 = vmul.f32 %v60, %v74
    %v77 = vmul.f32 %v61, %v75
    %v78 = vpack.c.bf16 %v77, %v76
    %v79 = vld [vmem:[%s1] sm:$0xf]
    %v80 = vld [vmem:[%s1 + $0x4] sm:$0xf]
    %v81 = vld [vmem:[%s1 + $0x8] sm:$0xf]
    %v82 = vld [vmem:[%s1 + $0xc] sm:$0xf]
    %v83 = vld [vmem:[%s2] sm:$0x1]
    %v85 = vlaneseq
    %v86 = vshrl.u32 %v85, 7
    %v87 = vsub.s32 0, %v86
    %v88 = vrot.slane %v83, %v87
    %v94 = vunpack.c.l.b16 %v79
    %v95 = vunpack.c.l.b16 %v80
    %v96 = vunpack.c.l.b16 %v81
    %v97 = vunpack.c.l.b16 %v82
    %v98 = vpack.c.b16 %v95, %v94
    %v99 = vpack.c.b16 %v97, %v96
    %v103 = vsel %vm50, %v78, 0
    %105 = vmatprep.subr.bf16.mxu0 0
    %106 = vmatpush1.bf16.msra.mxu0 %v98
    %107 = vmatprep.subr.bf16.mxu0 0
    %108 = vmatpush1.bf16.msra.mxu0 %v99
    %109 = vmatprep.subr.bf16.mxu0 0
    %110 = vmatpush1.bf16.msra.mxu0 0
    %111 = vmatprep.subr.bf16.mxu0 0
    %112 = vmatpush1.bf16.msra.mxu0 0
    %113 = vmatprep.subr.bf16.mxu0 0
    %114 = vmatpush1.bf16.msra.mxu0 0
    %115 = vmatprep.subr.bf16.mxu0 0
    %116 = vmatpush1.bf16.msra.mxu0 0
    %117 = vmatprep.subr.bf16.mxu0 0
    %118 = vmatpush1.bf16.msra.mxu0 0
    %119 = vmatprep.subr.bf16.mxu0 0
    %120 = vmatpush1.bf16.msra.mxu0 0
    %121 = vmatprep.subr.bf16.mxu0 0
    %122 = vmatpush1.bf16.msra.mxu0 0
    %123 = vmatprep.subr.bf16.mxu0 0
    %124 = vmatpush1.bf16.msra.mxu0 0
    %125 = vmatprep.subr.bf16.mxu0 0
    %126 = vmatpush1.bf16.msra.mxu0 0
    %127 = vmatprep.subr.bf16.mxu0 0
    %128 = vmatpush1.bf16.msra.mxu0 0
    %129 = vmatprep.subr.bf16.mxu0 0
    %130 = vmatpush1.bf16.msra.mxu0 0
    %131 = vmatprep.subr.bf16.mxu0 0
    %132 = vmatpush1.bf16.msra.mxu0 0
    %133 = vmatprep.subr.bf16.mxu0 0
    %134 = vmatpush1.bf16.msra.mxu0 0
    %135 = vmatprep.subr.bf16.mxu0 0
    %136 = vmatpush1.bf16.msra.mxu0 0
    %137 = vmatprep.mubr.bf16.mxu0 0
    %138 = vmatmul.mubr.bf16.gmra.mrb[0].mxu0 %v103
    %v139 = vpop.f32.mrb[0].mxu0
    %v140 = vadd.f32 %v88, %v139
    %v141 = vpop.f32.mrb[0].mxu0
    %v142 = vpop.f32.mrb[0].mxu0
    %v143 = vadd.f32 %v88, %v142
    %v144 = vpop.f32.mrb[0].mxu0
    %145 = vdwg.mxu0
    %v146 = vpack.c.bf16 %v143, %v140
    %vm147 = vcmask 785408
    %148 = vst.msk [vmem:[#allocation2] sm:$0xff] %vm147, %v146
    %v149 = vlaneseq
    %v150 = vshrl.u32 %v149, 7
    %v151 = vadd.s32 %v150, 8
    %v152 = vlaneseq
    %v153 = vand.u32 %v152, 127
    %vm154 = vcmp.lt.s32.totalorder %v150, 0
    %v155 = vsub.s32 0, %v150
    %v156 = vsel %vm154, %v155, %v150
    %v157 = vshrl.u32 %v156, 1
    %v158 = vand.u32 %v156, 1
    %v159 = vsub.s32 0, %v158
    %v160 = vsel %vm154, %v159, %v158
    %vm161 = vcmp.lt.s32.totalorder %v151, 0
    %v162 = vsub.s32 0, %v151
    %v163 = vsel %vm161, %v162, %v151
    %v164 = vshrl.u32 %v163, 1
    %v165 = vand.u32 %v163, 1
    %v166 = vsub.s32 0, %v165
    %v167 = vsel %vm161, %v166, %v165
    %vm168 = vcmp.ne.s32.totalorder %v160, 0
    %vm169 = vcmp.ne.s32.totalorder %v167, 0
    %vm170 = vcmp.lt.s32.totalorder %v160, 0
    %vm171 = vcmp.lt.s32.totalorder %v167, 0
    %vm172 = vmand %vm170, %vm168
    %vm173 = vmand %vm171, %vm169
    %v174 = vadd.s32 %v160, 2
    %v175 = vadd.s32 %v167, 2
    %v176 = vsel %vm172, %v174, %v160
    %v177 = vsel %vm173, %v175, %v167
    %vm178 = vcmp.lt.s32.totalorder %v153, 0
    %v179 = vsub.s32 0, %v153
    %v180 = vsel %vm178, %v179, %v153
    %v181 = vshrl.u32 %v180, 1
    %v182 = vand.u32 %v180, 1
    %v183 = vsub.s32 0, %v182
    %v184 = vsel %vm178, %v183, %v182
    %vm185 = vcmp.ne.s32.totalorder %v184, 0
    %vm186 = vcmp.lt.s32.totalorder %v184, 0
    %vm187 = vmand %vm186, %vm185
    %v188 = vadd.s32 %v184, 2
    %v189 = vsel %vm187, %v188, %v184
    %vm190 = vcmp.eq.s32.totalorder %v176, %v189
    %vm191 = vcmp.eq.s32.totalorder %v177, %v189
    %v192 = vld [vmem:[#allocation2] sm:$0xff]
    %194 = vrot.lane.b32.xlu0 %v192, 96
    %v195 = vpop.permute.xlu0 %194
    %vm196 = vcmask 64512
    %v198 = vsel %vm196, %v192, 0
    %v201 = vsel %vm196, %v195, 0
    %203 = vmatprep.subr.bf16.mxu0 0
    %204 = vmatpush1.bf16.xpose.msra.mxu0 %v201
    %205 = vmatprep.subr.bf16.mxu0 0
    %206 = vmatpush1.bf16.xpose.msra.mxu0 0
    %207 = vmatprep.subr.bf16.mxu0 0
    %208 = vmatpush1.bf16.xpose.msra.mxu0 0
    %209 = vmatprep.subr.bf16.mxu0 0
    %210 = vmatpush1.bf16.xpose.msra.mxu0 0
    %211 = vmatprep.subr.bf16.mxu0 0
    %212 = vmatpush1.bf16.xpose.msra.mxu0 0
    %213 = vmatprep.subr.bf16.mxu0 0
    %214 = vmatpush1.bf16.xpose.msra.mxu0 0
    %215 = vmatprep.subr.bf16.mxu0 0
    %216 = vmatpush1.bf16.xpose.msra.mxu0 0
    %217 = vmatprep.subr.bf16.mxu0 0
    %218 = vmatpush1.bf16.xpose.msra.mxu0 0
    %219 = vmatprep.subr.bf16.mxu0 0
    %220 = vmatpush1.bf16.xpose.msra.mxu0 0
    %221 = vmatprep.subr.bf16.mxu0 0
    %222 = vmatpush1.bf16.xpose.msra.mxu0 0
    %223 = vmatprep.subr.bf16.mxu0 0
    %224 = vmatpush1.bf16.xpose.msra.mxu0 0
    %225 = vmatprep.subr.bf16.mxu0 0
    %226 = vmatpush1.bf16.xpose.msra.mxu0 0
    %227 = vmatprep.subr.bf16.mxu0 0
    %228 = vmatpush1.bf16.xpose.msra.mxu0 0
    %229 = vmatprep.subr.bf16.mxu0 0
    %230 = vmatpush1.bf16.xpose.msra.mxu0 0
    %231 = vmatprep.subr.bf16.mxu0 0
    %232 = vmatpush1.bf16.xpose.msra.mxu0 0
    %233 = vmatprep.subr.bf16.mxu0 0
    %234 = vmatpush1.bf16.xpose.msra.mxu0 0
    %235 = vmatprep.mubr.bf16.mxu0 0
    %236 = vmatmul.mubr.bf16.gmra.mrb[0].mxu0 %v198
    %v237 = vpop.f32.mrb[0].mxu0
    %v238 = vadd.f32 0.0, %v237
    %v239 = vpop.f32.mrb[0].mxu0
    %v240 = vpop.f32.mrb[0].mxu0
    %v241 = vadd.f32 0.0, %v240
    %v242 = vpop.f32.mrb[0].mxu0
    %243 = vdwg.mxu0
    %v244 = vsel %vm190, %v238, -1e+30
    %v245 = vsel %vm191, %v241, -1e+30
    %vm246 = vcmask 130048
    %v247 = vsel %vm246, %v244, -inf
    %248 = vmax.xlane.f32.xlu0 %v247
    %v249 = vpop.xlane.xlu0 %248
    %v250 = vsel %vm246, %v245, -inf
    %251 = vmax.xlane.f32.xlu0 %v250
    %v252 = vpop.xlane.xlu0 %251
    %v253 = vsub.f32 %v244, %v249
    %v254 = vsub.f32 %v245, %v252
    %v255 = vmul.f32 %v253, 1.442695
    %v256 = vpow.pop %v255
    %v257 = vmul.f32 %v254, 1.442695
    %v258 = vpow.pop %v257
    %v259 = vsel %vm246, %v256, 0.0
    %260 = vadd.xlane.f32.xlu0 %v259
    %v261 = vpop.xlane.xlu0 %260
    %v262 = vsel %vm246, %v258, 0.0
    %263 = vadd.xlane.f32.xlu0 %v262
    %v264 = vpop.xlane.xlu0 %263
    %v265 = vrcp.pop %v261
    %v266 = vrcp.pop %v264
    %v267 = vmul.f32 %v256, %v265
    %v268 = vmul.f32 %v258, %v266
    %v269 = vpack.c.bf16 %v268, %v267
    %270 = vrot.lane.b32.xlu0 %v192, 64
    %v271 = vpop.permute.xlu0 %270
    %v274 = vsel %vm246, %v269, 0
    %276 = vmatprep.subr.bf16.mxu0 0
    %277 = vmatpush1.bf16.msra.mxu0 %v271
    %278 = vmatprep.subr.bf16.mxu0 0
    %279 = vmatpush1.bf16.msra.mxu0 0
    %280 = vmatprep.subr.bf16.mxu0 0
    %281 = vmatpush1.bf16.msra.mxu0 0
    %282 = vmatprep.subr.bf16.mxu0 0
    %283 = vmatpush1.bf16.msra.mxu0 0
    %284 = vmatprep.subr.bf16.mxu0 0
    %285 = vmatpush1.bf16.msra.mxu0 0
    %286 = vmatprep.subr.bf16.mxu0 0
    %287 = vmatpush1.bf16.msra.mxu0 0
    %288 = vmatprep.subr.bf16.mxu0 0
    %289 = vmatpush1.bf16.msra.mxu0 0
    %290 = vmatprep.subr.bf16.mxu0 0
    %291 = vmatpush1.bf16.msra.mxu0 0
    %292 = vmatprep.subr.bf16.mxu0 0
    %293 = vmatpush1.bf16.msra.mxu0 0
    %294 = vmatprep.subr.bf16.mxu0 0
    %295 = vmatpush1.bf16.msra.mxu0 0
    %296 = vmatprep.subr.bf16.mxu0 0
    %297 = vmatpush1.bf16.msra.mxu0 0
    %298 = vmatprep.subr.bf16.mxu0 0
    %299 = vmatpush1.bf16.msra.mxu0 0
    %300 = vmatprep.subr.bf16.mxu0 0
    %301 = vmatpush1.bf16.msra.mxu0 0
    %302 = vmatprep.subr.bf16.mxu0 0
    %303 = vmatpush1.bf16.msra.mxu0 0
    %304 = vmatprep.subr.bf16.mxu0 0
    %305 = vmatpush1.bf16.msra.mxu0 0
    %306 = vmatprep.subr.bf16.mxu0 0
    %307 = vmatpush1.bf16.msra.mxu0 0
    %308 = vmatprep.mubr.bf16.mxu0 0
    %309 = vmatmul.mubr.bf16.gmra.mrb[0].mxu0 %v274
    %v310 = vpop.f32.mrb[0].mxu0
    %v311 = vadd.f32 0.0, %v310
    %v312 = vpop.f32.mrb[0].mxu0
    %v313 = vpop.f32.mrb[0].mxu0
    %v314 = vadd.f32 0.0, %v313
    %v315 = vpop.f32.mrb[0].mxu0
    %316 = vdwg.mxu0
    %317 = vrot.lane.b32.xlu0 %v192, 120
    %v318 = vpop.permute.xlu0 %317
    %319 = vrot.lane.b32.xlu0 %v192, 88
    %v320 = vpop.permute.xlu0 %319
    %v322 = vsel %vm196, %v318, 0
    %v325 = vsel %vm196, %v320, 0
    %327 = vmatprep.subr.bf16.mxu0 0
    %328 = vmatpush1.bf16.xpose.msra.mxu0 %v325
    %329 = vmatprep.subr.bf16.mxu0 0
    %330 = vmatpush1.bf16.xpose.msra.mxu0 0
    %331 = vmatprep.subr.bf16.mxu0 0
    %332 = vmatpush1.bf16.xpose.msra.mxu0 0
    %333 = vmatprep.subr.bf16.mxu0 0
    %334 = vmatpush1.bf16.xpose.msra.mxu0 0
    %335 = vmatprep.subr.bf16.mxu0 0
    %336 = vmatpush1.bf16.xpose.msra.mxu0 0
    %337 = vmatprep.subr.bf16.mxu0 0
    %338 = vmatpush1.bf16.xpose.msra.mxu0 0
    %339 = vmatprep.subr.bf16.mxu0 0
    %340 = vmatpush1.bf16.xpose.msra.mxu0 0
    %341 = vmatprep.subr.bf16.mxu0 0
    %342 = vmatpush1.bf16.xpose.msra.mxu0 0
    %343 = vmatprep.subr.bf16.mxu0 0
    %344 = vmatpush1.bf16.xpose.msra.mxu0 0
    %345 = vmatprep.subr.bf16.mxu0 0
    %346 = vmatpush1.bf16.xpose.msra.mxu0 0
    %347 = vmatprep.subr.bf16.mxu0 0
    %348 = vmatpush1.bf16.xpose.msra.mxu0 0
    %349 = vmatprep.subr.bf16.mxu0 0
    %350 = vmatpush1.bf16.xpose.msra.mxu0 0
    %351 = vmatprep.subr.bf16.mxu0 0
    %352 = vmatpush1.bf16.xpose.msra.mxu0 0
    %353 = vmatprep.subr.bf16.mxu0 0
    %354 = vmatpush1.bf16.xpose.msra.mxu0 0
    %355 = vmatprep.subr.bf16.mxu0 0
    %356 = vmatpush1.bf16.xpose.msra.mxu0 0
    %357 = vmatprep.subr.bf16.mxu0 0
    %358 = vmatpush1.bf16.xpose.msra.mxu0 0
    %359 = vmatprep.mubr.bf16.mxu0 0
    %360 = vmatmul.mubr.bf16.gmra.mrb[0].mxu0 %v322
    %v361 = vpop.f32.mrb[0].mxu0
    %v362 = vadd.f32 0.0, %v361
    %v363 = vpop.f32.mrb[0].mxu0
    %v364 = vpop.f32.mrb[0].mxu0
    %v365 = vadd.f32 0.0, %v364
    %v366 = vpop.f32.mrb[0].mxu0
    %367 = vdwg.mxu0
    %v368 = vsel %vm190, %v362, -1e+30
    %v369 = vsel %vm191, %v365, -1e+30
    %v370 = vsel %vm246, %v368, -inf
    %371 = vmax.xlane.f32.xlu0 %v370
    %v372 = vpop.xlane.xlu0 %371
    %v373 = vsel %vm246, %v369, -inf
    %374 = vmax.xlane.f32.xlu0 %v373
    %v375 = vpop.xlane.xlu0 %374
    %v376 = vsub.f32 %v368, %v372
    %v377 = vsub.f32 %v369, %v375
    %v378 = vmul.f32 %v376, 1.442695
    %v379 = vpow.pop %v378
    %v380 = vmul.f32 %v377, 1.442695
    %v381 = vpow.pop %v380
    %v382 = vsel %vm246, %v379, 0.0
    %383 = vadd.xlane.f32.xlu0 %v382
    %v384 = vpop.xlane.xlu0 %383
    %v385 = vsel %vm246, %v381, 0.0
    %386 = vadd.xlane.f32.xlu0 %v385
    %v387 = vpop.xlane.xlu0 %386
    %v388 = vrcp.pop %v384
    %v389 = vrcp.pop %v387
    %v390 = vmul.f32 %v379, %v388
    %v391 = vmul.f32 %v381, %v389
    %v392 = vpack.c.bf16 %v391, %v390
    %393 = vrot.lane.b32.xlu0 %v192, 56
    %v394 = vpop.permute.xlu0 %393
    %v397 = vsel %vm246, %v392, 0
    %399 = vmatprep.subr.bf16.mxu0 0
    %400 = vmatpush1.bf16.msra.mxu0 %v394
    %401 = vmatprep.subr.bf16.mxu0 0
    %402 = vmatpush1.bf16.msra.mxu0 0
    %403 = vmatprep.subr.bf16.mxu0 0
    %404 = vmatpush1.bf16.msra.mxu0 0
    %405 = vmatprep.subr.bf16.mxu0 0
    %406 = vmatpush1.bf16.msra.mxu0 0
    %407 = vmatprep.subr.bf16.mxu0 0
    %408 = vmatpush1.bf16.msra.mxu0 0
    %409 = vmatprep.subr.bf16.mxu0 0
    %410 = vmatpush1.bf16.msra.mxu0 0
    %411 = vmatprep.subr.bf16.mxu0 0
    %412 = vmatpush1.bf16.msra.mxu0 0
    %413 = vmatprep.subr.bf16.mxu0 0
    %414 = vmatpush1.bf16.msra.mxu0 0
    %415 = vmatprep.subr.bf16.mxu0 0
    %416 = vmatpush1.bf16.msra.mxu0 0
    %417 = vmatprep.subr.bf16.mxu0 0
    %418 = vmatpush1.bf16.msra.mxu0 0
    %419 = vmatprep.subr.bf16.mxu0 0
    %420 = vmatpush1.bf16.msra.mxu0 0
    %421 = vmatprep.subr.bf16.mxu0 0
    %422 = vmatpush1.bf16.msra.mxu0 0
    %423 = vmatprep.subr.bf16.mxu0 0
    %424 = vmatpush1.bf16.msra.mxu0 0
    %425 = vmatprep.subr.bf16.mxu0 0
    %426 = vmatpush1.bf16.msra.mxu0 0
    %427 = vmatprep.subr.bf16.mxu0 0
    %428 = vmatpush1.bf16.msra.mxu0 0
    %429 = vmatprep.subr.bf16.mxu0 0
    %430 = vmatpush1.bf16.msra.mxu0 0
    %431 = vmatprep.mubr.bf16.mxu0 0
    %432 = vmatmul.mubr.bf16.gmra.mrb[0].mxu0 %v397
    %v433 = vpop.f32.mrb[0].mxu0
    %v434 = vadd.f32 0.0, %v433
    %v435 = vpop.f32.mrb[0].mxu0
    %v436 = vpop.f32.mrb[0].mxu0
    %v437 = vadd.f32 0.0, %v436
    %v438 = vpop.f32.mrb[0].mxu0
    %439 = vdwg.mxu0
    %440 = vrot.lane.b32.xlu0 %v192, 112
    %v441 = vpop.permute.xlu0 %440
    %442 = vrot.lane.b32.xlu0 %v192, 80
    %v443 = vpop.permute.xlu0 %442
    %v445 = vsel %vm196, %v441, 0
    %v448 = vsel %vm196, %v443, 0
    %450 = vmatprep.subr.bf16.mxu0 0
    %451 = vmatpush1.bf16.xpose.msra.mxu0 %v448
    %452 = vmatprep.subr.bf16.mxu0 0
    %453 = vmatpush1.bf16.xpose.msra.mxu0 0
    %454 = vmatprep.subr.bf16.mxu0 0
    %455 = vmatpush1.bf16.xpose.msra.mxu0 0
    %456 = vmatprep.subr.bf16.mxu0 0
    %457 = vmatpush1.bf16.xpose.msra.mxu0 0
    %458 = vmatprep.subr.bf16.mxu0 0
    %459 = vmatpush1.bf16.xpose.msra.mxu0 0
    %460 = vmatprep.subr.bf16.mxu0 0
    %461 = vmatpush1.bf16.xpose.msra.mxu0 0
    %462 = vmatprep.subr.bf16.mxu0 0
    %463 = vmatpush1.bf16.xpose.msra.mxu0 0
    %464 = vmatprep.subr.bf16.mxu0 0
    %465 = vmatpush1.bf16.xpose.msra.mxu0 0
    %466 = vmatprep.subr.bf16.mxu0 0
    %467 = vmatpush1.bf16.xpose.msra.mxu0 0
    %468 = vmatprep.subr.bf16.mxu0 0
    %469 = vmatpush1.bf16.xpose.msra.mxu0 0
    %470 = vmatprep.subr.bf16.mxu0 0
    %471 = vmatpush1.bf16.xpose.msra.mxu0 0
    %472 = vmatprep.subr.bf16.mxu0 0
    %473 = vmatpush1.bf16.xpose.msra.mxu0 0
    %474 = vmatprep.subr.bf16.mxu0 0
    %475 = vmatpush1.bf16.xpose.msra.mxu0 0
    %476 = vmatprep.subr.bf16.mxu0 0
    %477 = vmatpush1.bf16.xpose.msra.mxu0 0
    %478 = vmatprep.subr.bf16.mxu0 0
    %479 = vmatpush1.bf16.xpose.msra.mxu0 0
    %480 = vmatprep.subr.bf16.mxu0 0
    %481 = vmatpush1.bf16.xpose.msra.mxu0 0
    %482 = vmatprep.mubr.bf16.mxu0 0
    %483 = vmatmul.mubr.bf16.gmra.mrb[0].mxu0 %v445
    %v484 = vpop.f32.mrb[0].mxu0
    %v485 = vadd.f32 0.0, %v484
    %v486 = vpop.f32.mrb[0].mxu0
    %v487 = vpop.f32.mrb[0].mxu0
    %v488 = vadd.f32 0.0, %v487
    %v489 = vpop.f32.mrb[0].mxu0
    %490 = vdwg.mxu0
    %v491 = vsel %vm190, %v485, -1e+30
    %v492 = vsel %vm191, %v488, -1e+30
    %v493 = vsel %vm246, %v491, -inf
    %494 = vmax.xlane.f32.xlu0 %v493
    %v495 = vpop.xlane.xlu0 %494
    %v496 = vsel %vm246, %v492, -inf
    %497 = vmax.xlane.f32.xlu0 %v496
    %v498 = vpop.xlane.xlu0 %497
    %v499 = vsub.f32 %v491, %v495
    %v500 = vsub.f32 %v492, %v498
    %v501 = vmul.f32 %v499, 1.442695
    %v502 = vpow.pop %v501
    %v503 = vmul.f32 %v500, 1.442695
    %v504 = vpow.pop %v503
    %v505 = vsel %vm246, %v502, 0.0
    %506 = vadd.xlane.f32.xlu0 %v505
    %v507 = vpop.xlane.xlu0 %506
    %v508 = vsel %vm246, %v504, 0.0
    %509 = vadd.xlane.f32.xlu0 %v508
    %v510 = vpop.xlane.xlu0 %509
    %v511 = vrcp.pop %v507
    %v512 = vrcp.pop %v510
    %v513 = vmul.f32 %v502, %v511
    %v514 = vmul.f32 %v504, %v512
    %v515 = vpack.c.bf16 %v514, %v513
    %516 = vrot.lane.b32.xlu0 %v192, 48
    %v517 = vpop.permute.xlu0 %516
    %v520 = vsel %vm246, %v515, 0
    %522 = vmatprep.subr.bf16.mxu0 0
    %523 = vmatpush1.bf16.msra.mxu0 %v517
    %524 = vmatprep.subr.bf16.mxu0 0
    %525 = vmatpush1.bf16.msra.mxu0 0
    %526 = vmatprep.subr.bf16.mxu0 0
    %527 = vmatpush1.bf16.msra.mxu0 0
    %528 = vmatprep.subr.bf16.mxu0 0
    %529 = vmatpush1.bf16.msra.mxu0 0
    %530 = vmatprep.subr.bf16.mxu0 0
    %531 = vmatpush1.bf16.msra.mxu0 0
    %532 = vmatprep.subr.bf16.mxu0 0
    %533 = vmatpush1.bf16.msra.mxu0 0
    %534 = vmatprep.subr.bf16.mxu0 0
    %535 = vmatpush1.bf16.msra.mxu0 0
    %536 = vmatprep.subr.bf16.mxu0 0
    %537 = vmatpush1.bf16.msra.mxu0 0
    %538 = vmatprep.subr.bf16.mxu0 0
    %539 = vmatpush1.bf16.msra.mxu0 0
    %540 = vmatprep.subr.bf16.mxu0 0
    %541 = vmatpush1.bf16.msra.mxu0 0
    %542 = vmatprep.subr.bf16.mxu0 0
    %543 = vmatpush1.bf16.msra.mxu0 0
    %544 = vmatprep.subr.bf16.mxu0 0
    %545 = vmatpush1.bf16.msra.mxu0 0
    %546 = vmatprep.subr.bf16.mxu0 0
    %547 = vmatpush1.bf16.msra.mxu0 0
    %548 = vmatprep.subr.bf16.mxu0 0
    %549 = vmatpush1.bf16.msra.mxu0 0
    %550 = vmatprep.subr.bf16.mxu0 0
    %551 = vmatpush1.bf16.msra.mxu0 0
    %552 = vmatprep.subr.bf16.mxu0 0
    %553 = vmatpush1.bf16.msra.mxu0 0
    %554 = vmatprep.mubr.bf16.mxu0 0
    %555 = vmatmul.mubr.bf16.gmra.mrb[0].mxu0 %v520
    %v556 = vpop.f32.mrb[0].mxu0
    %v557 = vadd.f32 0.0, %v556
    %v558 = vpop.f32.mrb[0].mxu0
    %v559 = vpop.f32.mrb[0].mxu0
    %v560 = vadd.f32 0.0, %v559
    %v561 = vpop.f32.mrb[0].mxu0
    %562 = vdwg.mxu0
    %563 = vrot.lane.b32.xlu0 %v192, 104
    %v564 = vpop.permute.xlu0 %563
    %565 = vrot.lane.b32.xlu0 %v192, 72
    %v566 = vpop.permute.xlu0 %565
    %v568 = vsel %vm196, %v564, 0
    %v571 = vsel %vm196, %v566, 0
    %573 = vmatprep.subr.bf16.mxu0 0
    %574 = vmatpush1.bf16.xpose.msra.mxu0 %v571
    %575 = vmatprep.subr.bf16.mxu0 0
    %576 = vmatpush1.bf16.xpose.msra.mxu0 0
    %577 = vmatprep.subr.bf16.mxu0 0
    %578 = vmatpush1.bf16.xpose.msra.mxu0 0
    %579 = vmatprep.subr.bf16.mxu0 0
    %580 = vmatpush1.bf16.xpose.msra.mxu0 0
    %581 = vmatprep.subr.bf16.mxu0 0
    %582 = vmatpush1.bf16.xpose.msra.mxu0 0
    %583 = vmatprep.subr.bf16.mxu0 0
    %584 = vmatpush1.bf16.xpose.msra.mxu0 0
    %585 = vmatprep.subr.bf16.mxu0 0
    %586 = vmatpush1.bf16.xpose.msra.mxu0 0
    %587 = vmatprep.subr.bf16.mxu0 0
    %588 = vmatpush1.bf16.xpose.msra.mxu0 0
    %589 = vmatprep.subr.bf16.mxu0 0
    %590 = vmatpush1.bf16.xpose.msra.mxu0 0
    %591 = vmatprep.subr.bf16.mxu0 0
    %592 = vmatpush1.bf16.xpose.msra.mxu0 0
    %593 = vmatprep.subr.bf16.mxu0 0
    %594 = vmatpush1.bf16.xpose.msra.mxu0 0
    %595 = vmatprep.subr.bf16.mxu0 0
    %596 = vmatpush1.bf16.xpose.msra.mxu0 0
    %597 = vmatprep.subr.bf16.mxu0 0
    %598 = vmatpush1.bf16.xpose.msra.mxu0 0
    %599 = vmatprep.subr.bf16.mxu0 0
    %600 = vmatpush1.bf16.xpose.msra.mxu0 0
    %601 = vmatprep.subr.bf16.mxu0 0
    %602 = vmatpush1.bf16.xpose.msra.mxu0 0
    %603 = vmatprep.subr.bf16.mxu0 0
    %604 = vmatpush1.bf16.xpose.msra.mxu0 0
    %605 = vmatprep.mubr.bf16.mxu0 0
    %606 = vmatmul.mubr.bf16.gmra.mrb[0].mxu0 %v568
    %v607 = vpop.f32.mrb[0].mxu0
    %v608 = vadd.f32 0.0, %v607
    %v609 = vpop.f32.mrb[0].mxu0
    %v610 = vpop.f32.mrb[0].mxu0
    %v611 = vadd.f32 0.0, %v610
    %v612 = vpop.f32.mrb[0].mxu0
    %613 = vdwg.mxu0
    %v614 = vsel %vm190, %v608, -1e+30
    %v615 = vsel %vm191, %v611, -1e+30
    %v616 = vsel %vm246, %v614, -inf
    %617 = vmax.xlane.f32.xlu0 %v616
    %v618 = vpop.xlane.xlu0 %617
    %v619 = vsel %vm246, %v615, -inf
    %620 = vmax.xlane.f32.xlu0 %v619
    %v621 = vpop.xlane.xlu0 %620
    %v622 = vsub.f32 %v614, %v618
    %v623 = vsub.f32 %v615, %v621
    %v624 = vmul.f32 %v622, 1.442695
    %v625 = vpow.pop %v624
    %v626 = vmul.f32 %v623, 1.442695
    %v627 = vpow.pop %v626
    %v628 = vsel %vm246, %v625, 0.0
    %629 = vadd.xlane.f32.xlu0 %v628
    %v630 = vpop.xlane.xlu0 %629
    %v631 = vsel %vm246, %v627, 0.0
    %632 = vadd.xlane.f32.xlu0 %v631
    %v633 = vpop.xlane.xlu0 %632
    %v634 = vrcp.pop %v630
    %v635 = vrcp.pop %v633
    %v636 = vmul.f32 %v625, %v634
    %v637 = vmul.f32 %v627, %v635
    %v638 = vpack.c.bf16 %v637, %v636
    %639 = vrot.lane.b32.xlu0 %v192, 40
    %v640 = vpop.permute.xlu0 %639
    %v643 = vsel %vm246, %v638, 0
    %645 = vmatprep.subr.bf16.mxu0 0
    %646 = vmatpush1.bf16.msra.mxu0 %v640
    %647 = vmatprep.subr.bf16.mxu0 0
    %648 = vmatpush1.bf16.msra.mxu0 0
    %649 = vmatprep.subr.bf16.mxu0 0
    %650 = vmatpush1.bf16.msra.mxu0 0
    %651 = vmatprep.subr.bf16.mxu0 0
    %652 = vmatpush1.bf16.msra.mxu0 0
    %653 = vmatprep.subr.bf16.mxu0 0
    %654 = vmatpush1.bf16.msra.mxu0 0
    %655 = vmatprep.subr.bf16.mxu0 0
    %656 = vmatpush1.bf16.msra.mxu0 0
    %657 = vmatprep.subr.bf16.mxu0 0
    %658 = vmatpush1.bf16.msra.mxu0 0
    %659 = vmatprep.subr.bf16.mxu0 0
    %660 = vmatpush1.bf16.msra.mxu0 0
    %661 = vmatprep.subr.bf16.mxu0 0
    %662 = vmatpush1.bf16.msra.mxu0 0
    %663 = vmatprep.subr.bf16.mxu0 0
    %664 = vmatpush1.bf16.msra.mxu0 0
    %665 = vmatprep.subr.bf16.mxu0 0
    %666 = vmatpush1.bf16.msra.mxu0 0
    %667 = vmatprep.subr.bf16.mxu0 0
    %668 = vmatpush1.bf16.msra.mxu0 0
    %669 = vmatprep.subr.bf16.mxu0 0
    %670 = vmatpush1.bf16.msra.mxu0 0
    %671 = vmatprep.subr.bf16.mxu0 0
    %672 = vmatpush1.bf16.msra.mxu0 0
    %673 = vmatprep.subr.bf16.mxu0 0
    %674 = vmatpush1.bf16.msra.mxu0 0
    %675 = vmatprep.subr.bf16.mxu0 0
    %676 = vmatpush1.bf16.msra.mxu0 0
    %677 = vmatprep.mubr.bf16.mxu0 0
    %678 = vmatmul.mubr.bf16.gmra.mrb[0].mxu0 %v643
    %v679 = vpop.f32.mrb[0].mxu0
    %v680 = vadd.f32 0.0, %v679
    %v681 = vpop.f32.mrb[0].mxu0
    %v682 = vpop.f32.mrb[0].mxu0
    %v683 = vadd.f32 0.0, %v682
    %v684 = vpop.f32.mrb[0].mxu0
    %685 = vdwg.mxu0
    %688 = vrot.lane.b32.xlu0 %v434, 8
    %v689 = vpop.permute.xlu0 %688
    %690 = vrot.lane.b32.xlu0 %v437, 8
    %v691 = vpop.permute.xlu0 %690
    %696 = vrot.lane.b32.xlu0 %v557, 16
    %v697 = vpop.permute.xlu0 %696
    %698 = vrot.lane.b32.xlu0 %v560, 16
    %v699 = vpop.permute.xlu0 %698
    %704 = vrot.lane.b32.xlu0 %v680, 24
    %v705 = vpop.permute.xlu0 %704
    %706 = vrot.lane.b32.xlu0 %v683, 24
    %v707 = vpop.permute.xlu0 %706
    %v710 = vsel %vm196, %v311, %v689
    %v711 = vsel %vm196, %v314, %v691
    %v712 = vsel %vm246, %v710, %v697
    %v713 = vsel %vm246, %v711, %v699
    %vm714 = vcmask 195584
    %v715 = vsel %vm714, %v712, %v705
    %v716 = vsel %vm714, %v713, %v707
    %v717 = vpack.c.bf16 %v716, %v715
    %v718 = vld [vmem:[%s3] sm:$0xf]
    %v719 = vld [vmem:[%s3 + $0x4] sm:$0xf]
    %v720 = vld [vmem:[%s3 + $0x8] sm:$0xf]
    %v721 = vld [vmem:[%s3 + $0xc] sm:$0xf]
    %v722 = vld [vmem:[%s4] sm:$0x1]
    %v724 = vlaneseq
    %v725 = vshrl.u32 %v724, 7
    %v726 = vsub.s32 0, %v725
    %v727 = vrot.slane %v722, %v726
    %v733 = vunpack.c.l.b16 %v718
    %v734 = vunpack.c.l.b16 %v719
    %v735 = vunpack.c.l.b16 %v720
    %v736 = vunpack.c.l.b16 %v721
    %v737 = vpack.c.b16 %v734, %v733
    %v738 = vpack.c.b16 %v736, %v735
    %v742 = vsel %vm50, %v717, 0
    %744 = vmatprep.subr.bf16.mxu0 0
    %745 = vmatpush1.bf16.msra.mxu0 %v737
    %746 = vmatprep.subr.bf16.mxu0 0
    %747 = vmatpush1.bf16.msra.mxu0 %v738
    %748 = vmatprep.subr.bf16.mxu0 0
    %749 = vmatpush1.bf16.msra.mxu0 0
    %750 = vmatprep.subr.bf16.mxu0 0
    %751 = vmatpush1.bf16.msra.mxu0 0
    %752 = vmatprep.subr.bf16.mxu0 0
    %753 = vmatpush1.bf16.msra.mxu0 0
    %754 = vmatprep.subr.bf16.mxu0 0
    %755 = vmatpush1.bf16.msra.mxu0 0
    %756 = vmatprep.subr.bf16.mxu0 0
    %757 = vmatpush1.bf16.msra.mxu0 0
    %758 = vmatprep.subr.bf16.mxu0 0
    %759 = vmatpush1.bf16.msra.mxu0 0
    %760 = vmatprep.subr.bf16.mxu0 0
    %761 = vmatpush1.bf16.msra.mxu0 0
    %762 = vmatprep.subr.bf16.mxu0 0
    %763 = vmatpush1.bf16.msra.mxu0 0
    %764 = vmatprep.subr.bf16.mxu0 0
    %765 = vmatpush1.bf16.msra.mxu0 0
    %766 = vmatprep.subr.bf16.mxu0 0
    %767 = vmatpush1.bf16.msra.mxu0 0
    %768 = vmatprep.subr.bf16.mxu0 0
    %769 = vmatpush1.bf16.msra.mxu0 0
    %770 = vmatprep.subr.bf16.mxu0 0
    %771 = vmatpush1.bf16.msra.mxu0 0
    %772 = vmatprep.subr.bf16.mxu0 0
    %773 = vmatpush1.bf16.msra.mxu0 0
    %774 = vmatprep.subr.bf16.mxu0 0
    %775 = vmatpush1.bf16.msra.mxu0 0
    %776 = vmatprep.mubr.bf16.mxu0 0
    %777 = vmatmul.mubr.bf16.gmra.mrb[0].mxu0 %v742
    %v778 = vpop.f32.mrb[0].mxu0
    %v779 = vadd.f32 %v727, %v778
    %v780 = vpop.f32.mrb[0].mxu0
    %v781 = vpop.f32.mrb[0].mxu0
    %v782 = vadd.f32 %v727, %v781
    %v783 = vpop.f32.mrb[0].mxu0
    %784 = vdwg.mxu0
    %v785 = vadd.f32 %v48, %v779
    %v786 = vadd.f32 %v49, %v782
    %v787 = vsel %vm50, %v785, 0.0
    %788 = vadd.xlane.f32.xlu0 %v787
    %v789 = vpop.xlane.xlu0 %788
    %v790 = vsel %vm50, %v786, 0.0
    %791 = vadd.xlane.f32.xlu0 %v790
    %v792 = vpop.xlane.xlu0 %791
    %v793 = vmul.f32 %v789, %v57
    %v794 = vmul.f32 %v792, %v57
    %v795 = vsub.f32 %v785, %v793
    %v796 = vsub.f32 %v786, %v794
    %v797 = vmul.f32 %v795, %v795
    %v798 = vmul.f32 %v796, %v796
    %v799 = vsel %vm50, %v797, 0.0
    %800 = vadd.xlane.f32.xlu0 %v799
    %v801 = vpop.xlane.xlu0 %800
    %v802 = vsel %vm50, %v798, 0.0
    %803 = vadd.xlane.f32.xlu0 %v802
    %v804 = vpop.xlane.xlu0 %803
    %v805 = vmul.f32 %v801, %v57
    %v806 = vmul.f32 %v804, %v57
    %v807 = vadd.f32 %v805, 1e-05
    %v808 = vadd.f32 %v806, 1e-05
    %v809 = vrsqrt.pop %v807
    %v810 = vrsqrt.pop %v808
    %v811 = vmul.f32 %v795, %v809
    %v812 = vmul.f32 %v796, %v810
    %v813 = vpack.c.bf16 %v812, %v811
    %v814 = vld [vmem:[#allocation3] sm:$0xf]
    %v815 = vld [vmem:[#allocation3 + $0x4] sm:$0xf]
    %v816 = vld [vmem:[#allocation3 + $0x8] sm:$0xf]
    %v817 = vld [vmem:[#allocation3 + $0xc] sm:$0xf]
    %v818 = vld [vmem:[%s6] sm:$0x1]
    %v820 = vlaneseq
    %v821 = vshrl.u32 %v820, 7
    %v822 = vsub.s32 0, %v821
    %v823 = vrot.slane %v818, %v822
    %v829 = vunpack.c.l.b16 %v814
    %v830 = vunpack.c.l.b16 %v815
    %v831 = vunpack.c.l.b16 %v816
    %v832 = vunpack.c.l.b16 %v817
    %v833 = vpack.c.b16 %v830, %v829
    %v834 = vpack.c.b16 %v832, %v831
    %v838 = vsel %vm50, %v813, 0
    %840 = vmatprep.subr.bf16.mxu0 0
    %841 = vmatpush1.bf16.msra.mxu0 %v833
    %842 = vmatprep.subr.bf16.mxu0 0
    %843 = vmatpush1.bf16.msra.mxu0 %v834
    %844 = vmatprep.subr.bf16.mxu0 0
    %845 = vmatpush1.bf16.msra.mxu0 0
    %846 = vmatprep.subr.bf16.mxu0 0
    %847 = vmatpush1.bf16.msra.mxu0 0
    %848 = vmatprep.subr.bf16.mxu0 0
    %849 = vmatpush1.bf16.msra.mxu0 0
    %850 = vmatprep.subr.bf16.mxu0 0
    %851 = vmatpush1.bf16.msra.mxu0 0
    %852 = vmatprep.subr.bf16.mxu0 0
    %853 = vmatpush1.bf16.msra.mxu0 0
    %854 = vmatprep.subr.bf16.mxu0 0
    %855 = vmatpush1.bf16.msra.mxu0 0
    %856 = vmatprep.subr.bf16.mxu0 0
    %857 = vmatpush1.bf16.msra.mxu0 0
    %858 = vmatprep.subr.bf16.mxu0 0
    %859 = vmatpush1.bf16.msra.mxu0 0
    %860 = vmatprep.subr.bf16.mxu0 0
    %861 = vmatpush1.bf16.msra.mxu0 0
    %862 = vmatprep.subr.bf16.mxu0 0
    %863 = vmatpush1.bf16.msra.mxu0 0
    %864 = vmatprep.subr.bf16.mxu0 0
    %865 = vmatpush1.bf16.msra.mxu0 0
    %866 = vmatprep.subr.bf16.mxu0 0
    %867 = vmatpush1.bf16.msra.mxu0 0
    %868 = vmatprep.subr.bf16.mxu0 0
    %869 = vmatpush1.bf16.msra.mxu0 0
    %870 = vmatprep.subr.bf16.mxu0 0
    %871 = vmatpush1.bf16.msra.mxu0 0
    %872 = vmatprep.mubr.bf16.mxu0 0
    %873 = vmatmul.mubr.bf16.gmra.mrb[0].mxu0 %v838
    %v874 = vpop.f32.mrb[0].mxu0
    %v875 = vadd.f32 %v823, %v874
    %v876 = vpop.f32.mrb[0].mxu0
    %v877 = vpop.f32.mrb[0].mxu0
    %v878 = vadd.f32 %v823, %v877
    %v879 = vpop.f32.mrb[0].mxu0
    %880 = vdwg.mxu0
    %v881 = vmax.f32 %v875, 0.0
    %v882 = vmax.f32 %v878, 0.0
    %v883 = vpack.c.bf16 %v882, %v881
    %v884 = vld [vmem:[%s7] sm:$0xf]
    %v885 = vld [vmem:[%s7 + $0x4] sm:$0xf]
    %v886 = vld [vmem:[%s7 + $0x8] sm:$0xf]
    %v887 = vld [vmem:[%s7 + $0xc] sm:$0xf]
    %v888 = vld [vmem:[%s7 + $0x10] sm:$0xf]
    %v889 = vld [vmem:[%s7 + $0x14] sm:$0xf]
    %v890 = vld [vmem:[%s7 + $0x18] sm:$0xf]
    %v891 = vld [vmem:[%s7 + $0x1c] sm:$0xf]
    %v892 = vld [vmem:[%s8] sm:$0x1]
    %v894 = vlaneseq
    %v895 = vshrl.u32 %v894, 7
    %v896 = vsub.s32 0, %v895
    %v897 = vrot.slane %v892, %v896
    %v907 = vunpack.c.l.b16 %v884
    %v908 = vunpack.c.l.b16 %v885
    %v909 = vunpack.c.l.b16 %v886
    %v910 = vunpack.c.l.b16 %v887
    %v911 = vunpack.c.l.b16 %v888
    %v912 = vunpack.c.l.b16 %v889
    %v913 = vunpack.c.l.b16 %v890
    %v914 = vunpack.c.l.b16 %v891
    %v915 = vpack.c.b16 %v908, %v907
    %v916 = vpack.c.b16 %v910, %v909
    %v917 = vpack.c.b16 %v912, %v911
    %v918 = vpack.c.b16 %v914, %v913
    %vm923 = vcmask 523264
    %v925 = vsel %vm923, %v883, 0
    %927 = vmatprep.subr.bf16.mxu0 0
    %928 = vmatpush1.bf16.msra.mxu0 %v915
    %929 = vmatprep.subr.bf16.mxu0 0
    %930 = vmatpush1.bf16.msra.mxu0 %v916
    %931 = vmatprep.subr.bf16.mxu0 0
    %932 = vmatpush1.bf16.msra.mxu0 %v917
    %933 = vmatprep.subr.bf16.mxu0 0
    %934 = vmatpush1.bf16.msra.mxu0 %v918
    %935 = vmatprep.subr.bf16.mxu0 0
    %936 = vmatpush1.bf16.msra.mxu0 0
    %937 = vmatprep.subr.bf16.mxu0 0
    %938 = vmatpush1.bf16.msra.mxu0 0
    %939 = vmatprep.subr.bf16.mxu0 0
    %940 = vmatpush1.bf16.msra.mxu0 0
    %941 = vmatprep.subr.bf16.mxu0 0
    %942 = vmatpush1.bf16.msra.mxu0 0
    %943 = vmatprep.subr.bf16.mxu0 0
    %944 = vmatpush1.bf16.msra.mxu0 0
    %945 = vmatprep.subr.bf16.mxu0 0
    %946 = vmatpush1.bf16.msra.mxu0 0
    %947 = vmatprep.subr.bf16.mxu0 0
    %948 = vmatpush1.bf16.msra.mxu0 0
    %949 = vmatprep.subr.bf16.mxu0 0
    %950 = vmatpush1.bf16.msra.mxu0 0
    %951 = vmatprep.subr.bf16.mxu0 0
    %952 = vmatpush1.bf16.msra.mxu0 0
    %953 = vmatprep.subr.bf16.mxu0 0
    %954 = vmatpush1.bf16.msra.mxu0 0
    %955 = vmatprep.subr.bf16.mxu0 0
    %956 = vmatpush1.bf16.msra.mxu0 0
    %957 = vmatprep.subr.bf16.mxu0 0
    %958 = vmatpush1.bf16.msra.mxu0 0
    %959 = vmatprep.mubr.bf16.mxu0 0
    %960 = vmatmul.mubr.bf16.gmra.mrb[0].mxu0 %v925
    %v961 = vpop.f32.mrb[0].mxu0
    %v962 = vadd.f32 %v897, %v961
    %v963 = vpop.f32.mrb[0].mxu0
    %v964 = vpop.f32.mrb[0].mxu0
    %v965 = vadd.f32 %v897, %v964
    %v966 = vpop.f32.mrb[0].mxu0
    %967 = vdwg.mxu0
    %v968 = vadd.f32 %v785, %v962
    %v969 = vadd.f32 %v786, %v965
    %970 = vst.msk [vmem:[#allocation6] sm:$0xff] %vm50, %v968
    %971 = vst.msk [vmem:[#allocation6 + $0x8] sm:$0xff] %vm50, %v969
    // Predicated region
    $region42: #{tpu_custom_call.1} parent=1 // pred_check
      _
    $region43: #{tpu_custom_call.1} parent=1 // pred_check_branch
      %973 = sbr.rel (0) target = $region45
    $region44: #{tpu_custom_call.1} parent=1 // pred_region
      %s975 = ssub.s32 256, 256
      %976 = vsyncadd [#allocation5], %s975
      %s977 = sshll.u32 [#allocation6], 4
      %s978 = int_to_ptr.vmem [resolvable:$true] %s977
      %983 = dma.vmem_to_hbm [thread:$0]  %s978, 256, %s9, [#allocation5], 128, 128, 8
    $region45: #{tpu_custom_call.1} parent=1 // pred_fallthru
      _
    // Predicated region
    $region46: #{tpu_custom_call.1} parent=1 // pred_check
      _
    $region47: #{tpu_custom_call.1} parent=1 // pred_check_branch
      %985 = sbr.rel (0) target = $region49
    $region48: #{tpu_custom_call.1} parent=1 // pred_region
      %986 = dma.done [#allocation5], 256
    $region49: #{tpu_custom_call.1} parent=1 // pred_fallthru
      _
    %987 = vsyncpa [#allocation4], 1
    %988 = vsyncpa [#allocation5], 1

</llo_original>
